<compile_context>
chip_gen: v5e
topology: v5e:2x2
jax: 0.10.0
libtpu: 0.0.40
codegen_flags: <defaults>
</compile_context>

<pallas_src>
import functools

import jax
import jax.numpy as jnp
from jax.experimental import pallas as pl
from jax.experimental.pallas import tpu as pltpu


def _cdiv(a, b):
    return (a + b - 1) // b


def _round_up(a, b):
    return _cdiv(a, b) * b


def _make_kernel(in_features, hidden):
    """Kernel closure over the static layer sizes (IN, H); OUT == 1."""

    def kernel(p_ref, xt_ref, o_ref):
        # p_ref : SMEM f32[(H*IN + 2H + 1)]  packed [w1, b1, w2, b2]
        # xt_ref: VMEM f32[IN, tile, 128]    dense batch block (batch on
        #                                    sublanes x lanes)
        # o_ref : VMEM     [tile, 128]       dense output block
        IN, H = in_features, hidden
        z = None
        for h in range(H):                                  # static unroll, H = 2
            # layer 1 row h: scalar x vreg FMAs on the VPU
            acc = p_ref[h * IN + 0] * xt_ref[0]
            for k in range(1, IN):                          # static unroll, IN <= 2
                acc = acc + p_ref[h * IN + k] * xt_ref[k]
            hact = jnp.maximum(acc + p_ref[H * IN + h], 0.0)        # ReLU
            term = p_ref[H * IN + H + h] * hact                     # layer 2
            z = term if z is None else z + term
        z = z + p_ref[H * IN + 2 * H]                               # b2
        # sigmoid(z) == 0.5 * tanh(0.5 * z) + 0.5  -- one EUP op, exact.
        o_ref[...] = (0.5 * jnp.tanh(0.5 * z) + 0.5).astype(o_ref.dtype)

    return kernel


def mlp_forward(x, w1, b1, w2, b2, *, rows_per_step=2048, out_dtype=jnp.float32):
    """Forward of Linear(IN,H) -> ReLU -> Linear(H,1) -> Sigmoid.

    x  : (B, IN)  (same layout as the PyTorch module input)
    w1 : (H, IN), b1 : (H,)   (PyTorch nn.Linear parameter layout)
    w2 : (1, H),  b2 : (1,)
    Returns (B, 1) in `out_dtype` (float32 by default; bf16 would halve the
    output HBM traffic if the consumer tolerates it).
    """
    B, IN = x.shape
    H = w1.shape[0]
    OUT = w2.shape[0]
    assert w1.shape == (H, IN) and w2.shape == (OUT, H) and OUT == 1

    LANES = 128
    SUB = 8

    # ---- tile selection: dense (8,128) blocks, >=2 grid steps when possible.
    rows_needed = max(1, _cdiv(B, LANES))           # 128 samples per row
    if rows_needed <= 2 * SUB:
        tile = _round_up(rows_needed, SUB)          # one small block
        nsteps = 1
    else:
        nsteps = max(2, _cdiv(rows_needed, rows_per_step))
        tile = _round_up(_cdiv(rows_needed, nsteps), SUB)
        nsteps = _cdiv(rows_needed, tile)
    rows = nsteps * tile
    Bp = rows * LANES

    # ---- parameters: one packed vector, lives in SMEM inside the kernel.
    params = jnp.concatenate(
        [w1.reshape(-1), b1.reshape(-1), w2.reshape(-1), b2.reshape(-1)]
    ).astype(jnp.float32)

    # ---- layout plumbing (outside the kernel): batch on sublanes x lanes.
    xt = x.astype(jnp.float32).T                    # (IN, B)
    if Bp != B:
        xt = jnp.pad(xt, ((0, 0), (0, Bp - B)))     # fused with the transpose
    xt = xt.reshape(IN, rows, LANES)                # free reshape, dense blocks

    kernel = _make_kernel(IN, H)

    out = pl.pallas_call(
        kernel,
        out_shape=jax.ShapeDtypeStruct((rows, LANES), out_dtype),
        grid=(nsteps,),
        in_specs=[
            # 9 scalars -> SMEM (no padded VMEM parameter tiles).
            pl.BlockSpec(memory_space=pltpu.MemorySpace.SMEM),
            # dense input blocks: (IN, tile, 128)
            pl.BlockSpec((IN, tile, LANES), lambda i: (0, i, 0)),
        ],
        out_specs=pl.BlockSpec((tile, LANES), lambda i: (i, 0)),
        compiler_params=pltpu.CompilerParams(
            # Batch tiles are independent -> shard across both TCs on v7x.
            dimension_semantics=("parallel",),
            vmem_limit_bytes=32 * 1024 * 1024,
        ),
    )(params, xt)

    # Output is already flat & dense; just drop the pad and restore (B, 1).
    return out.reshape(Bp)[:B].reshape(B, OUT)


def init_params(key, in_features, hidden=2, out_features=1):
    """Deterministic init mimicking nn.Linear: U(-1/sqrt(fan_in), 1/sqrt(fan_in))."""
    k1, k2, k3, k4 = jax.random.split(key, 4)
    lim1 = 1.0 / jnp.sqrt(in_features)
    lim2 = 1.0 / jnp.sqrt(hidden)
    w1 = jax.random.uniform(k1, (hidden, in_features), jnp.float32, -lim1, lim1)
    b1 = jax.random.uniform(k2, (hidden,), jnp.float32, -lim1, lim1)
    w2 = jax.random.uniform(k3, (out_features, hidden), jnp.float32, -lim2, lim2)
    b2 = jax.random.uniform(k4, (out_features,), jnp.float32, -lim2, lim2)
    return w1, b1, w2, b2


if __name__ == "__main__":
    key = jax.random.PRNGKey(0)
    w1, b1, w2, b2 = init_params(key, in_features=2)

    def ref_fn(xv):
        return jax.nn.sigmoid(jnp.maximum(xv @ w1.T + b1, 0.0) @ w2.T + b2)

    fwd = jax.jit(functools.partial(mlp_forward, w1=w1, b1=b1, w2=w2, b2=b2))

    # Binary-operation truth-table inputs (the module's datasets['binary']).
    x = jnp.array([[0.0, 0.0], [0.0, 1.0], [1.0, 0.0], [1.0, 1.0]],
                  dtype=jnp.float32)
    out = jax.block_until_ready(fwd(x))
    ref = ref_fn(x)
    assert out.shape == (4, 1), out.shape
    assert jnp.allclose(out, ref, atol=1e-4, rtol=1e-4), (out, ref)

    # A modest ragged batch: exercises dense (8,128) packing, batch padding and
    # the multi-step "parallel" grid path (both TensorCores on v7x).
    xb = jax.random.uniform(jax.random.PRNGKey(1), (3000, 2), jnp.float32)
    outb = jax.block_until_ready(fwd(xb))
    refb = ref_fn(xb)
    assert outb.shape == (3000, 1), outb.shape
    assert jnp.allclose(outb, refb, atol=1e-4, rtol=1e-4)

    print("KERNEL_OK")
</pallas_src>

<mosaic_0001>
module attributes {stable_mosaic.version = 11 : i64} {
  func.func @kernel(%arg0: i32, %arg1: memref<9xf32, #tpu.memory_space<smem>>, %arg2: memref<2x8x128xf32, #tpu.memory_space<vmem>>, %arg3: memref<8x128xf32, #tpu.memory_space<vmem>>) attributes {dimension_semantics = [#tpu.dimension_semantics<parallel>], iteration_bounds = array<i64: 1>, scalar_prefetch = 0 : i64, scratch_operands = 0 : i64, tpu.core_type = #tpu.core_type<tc>, window_params = [{transform_indices = @transform_0, window_bounds = array<i64: 9>}, {transform_indices = @transform_1, window_bounds = array<i64: 2, 8, 128>}, {transform_indices = @transform_2, window_bounds = array<i64: 8, 128>}]} {
    %c0 = arith.constant 0 : index
    %0 = memref.load %arg1[%c0] : memref<9xf32, #tpu.memory_space<smem>>
    %c0_0 = arith.constant 0 : index
    %c0_1 = arith.constant 0 : index
    %c0_2 = arith.constant 0 : index
    %1 = vector.load %arg2[%c0_0, %c0_1, %c0_2] : memref<2x8x128xf32, #tpu.memory_space<vmem>>, vector<1x8x128xf32>
    %2 = vector.shape_cast %1 : vector<1x8x128xf32> to vector<8x128xf32>
    %3 = vector.broadcast %0 : f32 to vector<8x128xf32>
    %4 = arith.mulf %3, %2 : vector<8x128xf32>
    %c1 = arith.constant 1 : index
    %5 = memref.load %arg1[%c1] : memref<9xf32, #tpu.memory_space<smem>>
    %c1_3 = arith.constant 1 : index
    %c0_4 = arith.constant 0 : index
    %c0_5 = arith.constant 0 : index
    %6 = vector.load %arg2[%c1_3, %c0_4, %c0_5] : memref<2x8x128xf32, #tpu.memory_space<vmem>>, vector<1x8x128xf32>
    %7 = vector.shape_cast %6 : vector<1x8x128xf32> to vector<8x128xf32>
    %8 = vector.broadcast %5 : f32 to vector<8x128xf32>
    %9 = arith.mulf %8, %7 : vector<8x128xf32>
    %10 = arith.addf %4, %9 : vector<8x128xf32>
    %c4 = arith.constant 4 : index
    %11 = memref.load %arg1[%c4] : memref<9xf32, #tpu.memory_space<smem>>
    %12 = vector.broadcast %11 : f32 to vector<8x128xf32>
    %13 = arith.addf %10, %12 : vector<8x128xf32>
    %cst = arith.constant 0.000000e+00 : f32
    %14 = vector.broadcast %cst : f32 to vector<8x128xf32>
    %15 = arith.maximumf %13, %14 : vector<8x128xf32>
    %c6 = arith.constant 6 : index
    %16 = memref.load %arg1[%c6] : memref<9xf32, #tpu.memory_space<smem>>
    %17 = vector.broadcast %16 : f32 to vector<8x128xf32>
    %18 = arith.mulf %17, %15 : vector<8x128xf32>
    %c2 = arith.constant 2 : index
    %19 = memref.load %arg1[%c2] : memref<9xf32, #tpu.memory_space<smem>>
    %c0_6 = arith.constant 0 : index
    %c0_7 = arith.constant 0 : index
    %c0_8 = arith.constant 0 : index
    %20 = vector.load %arg2[%c0_6, %c0_7, %c0_8] : memref<2x8x128xf32, #tpu.memory_space<vmem>>, vector<1x8x128xf32>
    %21 = vector.shape_cast %20 : vector<1x8x128xf32> to vector<8x128xf32>
    %22 = vector.broadcast %19 : f32 to vector<8x128xf32>
    %23 = arith.mulf %22, %21 : vector<8x128xf32>
    %c3 = arith.constant 3 : index
    %24 = memref.load %arg1[%c3] : memref<9xf32, #tpu.memory_space<smem>>
    %c1_9 = arith.constant 1 : index
    %c0_10 = arith.constant 0 : index
    %c0_11 = arith.constant 0 : index
    %25 = vector.load %arg2[%c1_9, %c0_10, %c0_11] : memref<2x8x128xf32, #tpu.memory_space<vmem>>, vector<1x8x128xf32>
    %26 = vector.shape_cast %25 : vector<1x8x128xf32> to vector<8x128xf32>
    %27 = vector.broadcast %24 : f32 to vector<8x128xf32>
    %28 = arith.mulf %27, %26 : vector<8x128xf32>
    %29 = arith.addf %23, %28 : vector<8x128xf32>
    %c5 = arith.constant 5 : index
    %30 = memref.load %arg1[%c5] : memref<9xf32, #tpu.memory_space<smem>>
    %31 = vector.broadcast %30 : f32 to vector<8x128xf32>
    %32 = arith.addf %29, %31 : vector<8x128xf32>
    %cst_12 = arith.constant 0.000000e+00 : f32
    %33 = vector.broadcast %cst_12 : f32 to vector<8x128xf32>
    %34 = arith.maximumf %32, %33 : vector<8x128xf32>
    %c7 = arith.constant 7 : index
    %35 = memref.load %arg1[%c7] : memref<9xf32, #tpu.memory_space<smem>>
    %36 = vector.broadcast %35 : f32 to vector<8x128xf32>
    %37 = arith.mulf %36, %34 : vector<8x128xf32>
    %38 = arith.addf %18, %37 : vector<8x128xf32>
    %c8 = arith.constant 8 : index
    %39 = memref.load %arg1[%c8] : memref<9xf32, #tpu.memory_space<smem>>
    %40 = vector.broadcast %39 : f32 to vector<8x128xf32>
    %41 = arith.addf %38, %40 : vector<8x128xf32>
    %cst_13 = arith.constant 5.000000e-01 : f32
    %42 = vector.broadcast %cst_13 : f32 to vector<8x128xf32>
    %43 = arith.mulf %42, %41 : vector<8x128xf32>
    %44 = math.tanh %43 : vector<8x128xf32>
    %cst_14 = arith.constant 5.000000e-01 : f32
    %45 = vector.broadcast %cst_14 : f32 to vector<8x128xf32>
    %46 = arith.mulf %45, %44 : vector<8x128xf32>
    %cst_15 = arith.constant 5.000000e-01 : f32
    %47 = vector.broadcast %cst_15 : f32 to vector<8x128xf32>
    %48 = arith.addf %46, %47 : vector<8x128xf32>
    %c0_16 = arith.constant 0 : index
    %c0_17 = arith.constant 0 : index
    %49 = vector.load %arg3[%c0_16, %c0_17] : memref<8x128xf32, #tpu.memory_space<vmem>>, vector<8x128xf32>
    tpu.vector_store %arg3[%c0_16, %c0_17], %48 {strides = array<i32>} : memref<8x128xf32, #tpu.memory_space<vmem>>, vector<8x128xf32>,
    return
  }
  func.func @transform_0(%arg0: i32) -> i32 {
    %c0_i32 = arith.constant 0 : i32
    %c0_i32_0 = arith.constant 0 : i32
    return %c0_i32 : i32
  }
  func.func @transform_1(%arg0: i32) -> (i32, i32, i32) {
    %c0_i32 = arith.constant 0 : i32
    %c0_i32_0 = arith.constant 0 : i32
    %c0_i32_1 = arith.constant 0 : i32
    return %c0_i32, %arg0, %c0_i32_0 : i32, i32, i32
  }
  func.func @transform_2(%arg0: i32) -> (i32, i32) {
    %c0_i32 = arith.constant 0 : i32
    %c0_i32_0 = arith.constant 0 : i32
    return %arg0, %c0_i32 : i32, i32
  }
}

</mosaic_0001>

<llo_original>
// kernel: mlp_forward.1
$region0: #{mlp_forward.1}
  #allocation0 [shape = 'u32[]', space=smem, size = 0x4, offset = 0x4, fixed_abs, tag = 'smem constant byte address 0x4 - core index']
  #allocation1 [shape = 'u32[72,128]{1,0:T(1,128)}', space=vmem, size = 0x9000, scoped, tag = 'internal scratch']
  %s0 = inlined_call_operand.vmem [shape: f32[9], index: 0, kind: input, shape index: {}]
  %s1 = inlined_call_operand.vmem [shape: f32[2,8,128], index: 1, kind: input, shape index: {}]
  %s2 = inlined_call_operand.vmem [shape: f32[8,128], index: 2, kind: output, shape index: {}]
  %s3 = sld [smem:[#allocation0]]
  $region22: #{mlp_forward.1} parent=0
    _
  %s5 = ssub.s32 1, %s3
  %s6 = scalar_select 0, %s5, %s3
  $region1: #{mlp_forward.1} parent=0
    #allocation2 [shape = 'u8[512]{0}', space=smem, size = 0x200, scoped, tag = 'input window, operand 0, single buffered']
    #allocation3 [shape = 's32[1]{0}', space=sflag, size = 0x4, scoped, tag = 'scoped memory for mlp_forward.1']
    %7 = vsyncpa [#allocation3], 0
    // Predicated region
    $region2: #{mlp_forward.1} parent=1 // pred_check
      _
    $region3: #{mlp_forward.1} parent=1 // pred_check_branch
      %9 = sbr.rel (0) target = $region5
    $region4: #{mlp_forward.1} parent=1 // pred_region
      %11 = vsyncadd [#allocation3], 0
      %s13 = sshll.u32 %s0, 4
      %s14 = int_to_ptr.vmem [resolvable:$true] %s13
      %16 = dma.vmem_to_smem %s14, 16, [#allocation2], [#allocation3]
    $region5: #{mlp_forward.1} parent=1 // pred_fallthru
      _
    // Predicated region
    $region6: #{mlp_forward.1} parent=1 // pred_check
      _
    $region7: #{mlp_forward.1} parent=1 // pred_check_branch
      %18 = sbr.rel (0) target = $region9
    $region8: #{mlp_forward.1} parent=1 // pred_region
      _
    $region9: #{mlp_forward.1} parent=1 // pred_fallthru
      _
    // Predicated region
    $region10: #{mlp_forward.1} parent=1 // pred_check
      _
    $region11: #{mlp_forward.1} parent=1 // pred_check_branch
      %20 = sbr.rel (0) target = $region13
    $region12: #{mlp_forward.1} parent=1 // pred_region
      %22 = dma.done [#allocation3], 16
    $region13: #{mlp_forward.1} parent=1 // pred_fallthru
      _
    %23 = sfence
    %s24 = sld [smem:[#allocation2]]
    %v25 = vld [vmem:[%s1] sm:$0xff]
    %v26 = vstv %s24
    %v27 = vmul.f32 %v26, %v25
    %s28 = sld [smem:[#allocation2 + $0x1]]
    %s29 = scalar_lea.vmem %s1, 8
    %v30 = vld [vmem:[%s29] sm:$0xff]
    %v31 = vstv %s28
    %v32 = vmul.f32 %v31, %v30
    %v33 = vadd.f32 %v27, %v32
    %s34 = sld [smem:[#allocation2 + $0x4]]
    %v35 = vstv %s34
    %v36 = vadd.f32 %v33, %v35
    %v37 = vmax.f32 %v36, 0.0
    %s38 = sld [smem:[#allocation2 + $0x6]]
    %v39 = vstv %s38
    %v40 = vmul.f32 %v39, %v37
    %s41 = sld [smem:[#allocation2 + $0x2]]
    %v42 = vstv %s41
    %v43 = vmul.f32 %v42, %v25
    %s44 = sld [smem:[#allocation2 + $0x3]]
    %v45 = vstv %s44
    %v46 = vmul.f32 %v45, %v30
    %v47 = vadd.f32 %v43, %v46
    %s48 = sld [smem:[#allocation2 + $0x5]]
    %v49 = vstv %s48
    %v50 = vadd.f32 %v47, %v49
    %v51 = vmax.f32 %v50, 0.0
    %s52 = sld [smem:[#allocation2 + $0x7]]
    %v53 = vstv %s52
    %v54 = vmul.f32 %v53, %v51
    %v55 = vadd.f32 %v40, %v54
    %s56 = sld [smem:[#allocation2 + $0x8]]
    %v57 = vstv %s56
    %v58 = vadd.f32 %v55, %v57
    %v59 = vmul.f32 %v58, 0.5
    %v60 = vtanh.pop %v59
    %v61 = vmul.f32 %v60, 0.5
    %v62 = vadd.f32 %v61, 0.5
    %63 = vst [vmem:[%s2] sm:$0xff] %v62
    // Predicated region
    $region14: #{mlp_forward.1} parent=1 // pred_check
      _
    $region15: #{mlp_forward.1} parent=1 // pred_check_branch
      %65 = sbr.rel (0) target = $region17
    $region16: #{mlp_forward.1} parent=1 // pred_region
      _
    $region17: #{mlp_forward.1} parent=1 // pred_fallthru
      _
    // Predicated region
    $region18: #{mlp_forward.1} parent=1 // pred_check
      _
    $region19: #{mlp_forward.1} parent=1 // pred_check_branch
      %67 = sbr.rel (0) target = $region21
    $region20: #{mlp_forward.1} parent=1 // pred_region
      _
    $region21: #{mlp_forward.1} parent=1 // pred_fallthru
      _
    %68 = vsyncpa [#allocation3], 1

</llo_original>
